<compile_context>
chip_gen: v7x
topology: tpu7x:2x2x1
jax: 0.10.0
libtpu: 0.0.40
codegen_flags: <defaults>
</compile_context>

<pallas_src>
import functools

import jax
import jax.numpy as jnp
from jax.experimental import pallas as pl
from jax.experimental.pallas import tpu as pltpu

KSIZE = 3          # kernel_size
PAD = KSIZE // 2   # "same" padding as in conv() helper


def _resblock_kernel(x_ref, w1_ref, b1_ref, w2_ref, b2_ref, mask_ref, o_ref, *, H, W, C):
    """Whole ResBlock for one image per grid step.

    x_ref   : (1, C, HW)   f32   one image, channels on sublanes, row-major flattened
                                  spatial (lane-dense) on lanes
    w1_ref  : (C, 9*C)     bf16  conv1 weights in im2col order (tap-major, then c_in)
    b1_ref  : (C, 1)       f32   conv1 bias
    w2_ref  : (C, 9*C)     bf16  conv2 weights in im2col order
    b2_ref  : (C, 1)       f32   conv2 bias
    mask_ref: (9*C, HW)    f32   0/1 validity mask per (tap, c_in) row -> zero padding
    o_ref   : (1, C, HW)   f32   output
    """
    HW = H * W
    x = x_ref[0]                                   # (C, HW) f32
    mask = mask_ref[...]                           # (9*C, HW) f32

    def im2col(img):
        # Build the (9*C, HW) patch matrix.  For tap (dh, dw) the neighbour value at
        # output position (h, w) lives at flat index i + dh*W + dw, so it is a static
        # lane roll (XLU) of the flattened image; all out-of-bounds / row-wrapped
        # positions are zeroed by ONE elementwise multiply with the precomputed mask
        # (identical to zero "same" padding).  Cast once to bf16 for the MXU.
        taps = []
        for dh in (-1, 0, 1):
            for dw in (-1, 0, 1):
                off = dh * W + dw
                taps.append(img if off == 0
                            else pltpu.roll(img, shift=(-off) % HW, axis=1))
        patches = jnp.concatenate(taps, axis=0)    # (9*C, HW) f32
        return (patches * mask).astype(jnp.bfloat16)

    # ---- conv1 -> bias -> ReLU : a single MXU matmul, lane dim = HW ----
    acc1 = jnp.dot(w1_ref[...], im2col(x), preferred_element_type=jnp.float32)  # (C, HW)
    mid = jnp.maximum(acc1 + b1_ref[...], 0.0)

    # ---- conv2 -> bias -> residual add (res += x), fused epilogue, one store ----
    acc2 = jnp.dot(w2_ref[...], im2col(mid), preferred_element_type=jnp.float32)  # (C, HW)
    o_ref[0] = acc2 + b2_ref[...] + x


def _tap_masks(H, W, C):
    """(9*C, H*W) f32 matrix of 0/1 validity masks, one row block per 3x3 tap (dh, dw),
    repeated across the C input channels so it lines up with the im2col patch rows."""
    h_idx = jnp.arange(H).reshape(H, 1)
    w_idx = jnp.arange(W).reshape(1, W)
    rows = []
    for dh in (-1, 0, 1):
        for dw in (-1, 0, 1):
            m = ((h_idx + dh >= 0) & (h_idx + dh < H) &
                 (w_idx + dw >= 0) & (w_idx + dw < W)).reshape(1, H * W)
            rows.append(jnp.broadcast_to(m, (C, H * W)))
    return jnp.concatenate(rows, axis=0).astype(jnp.float32)


def resblock_forward(x_nchw, w1, b1, w2, b2):
    """x_nchw: (N, C, H, W); w*: (Cout, Cin, K, K) PyTorch layout; b*: (C,)."""
    N, C, H, W = x_nchw.shape
    HW = H * W

    # NCHW already has spatial contiguous last -> flattening (H, W) into the lane
    # axis is a free reshape: no transpose, no pre-padding round trips through HBM.
    x2d = x_nchw.reshape(N, C, HW).astype(jnp.float32)

    # PyTorch (Cout, Cin, kh, kw) -> im2col (Cout, 9*Cin), tap-major then c_in,
    # cast to bf16 so the MXU runs at its native precision (f32 accumulation kept).
    w1_2d = jnp.transpose(w1, (0, 2, 3, 1)).reshape(C, 9 * C).astype(jnp.bfloat16)
    w2_2d = jnp.transpose(w2, (0, 2, 3, 1)).reshape(C, 9 * C).astype(jnp.bfloat16)
    b1c = b1.reshape(C, 1).astype(jnp.float32)
    b2c = b2.reshape(C, 1).astype(jnp.float32)
    masks = _tap_masks(H, W, C)                    # (9*C, HW)

    kernel = functools.partial(_resblock_kernel, H=H, W=W, C=C)

    out2d = pl.pallas_call(
        kernel,
        out_shape=jax.ShapeDtypeStruct((N, C, HW), jnp.float32),
        grid=(N,),
        in_specs=[
            pl.BlockSpec((1, C, HW), lambda n: (n, 0, 0)),     # x: one image per step
            pl.BlockSpec((C, 9 * C), lambda n: (0, 0)),        # conv1 weights (whole)
            pl.BlockSpec((C, 1), lambda n: (0, 0)),            # conv1 bias
            pl.BlockSpec((C, 9 * C), lambda n: (0, 0)),        # conv2 weights (whole)
            pl.BlockSpec((C, 1), lambda n: (0, 0)),            # conv2 bias
            pl.BlockSpec((9 * C, HW), lambda n: (0, 0)),       # tap boundary masks
        ],
        out_specs=pl.BlockSpec((1, C, HW), lambda n: (n, 0, 0)),
        compiler_params=pltpu.CompilerParams(
            dimension_semantics=("parallel",),     # batch images -> both TCs on v7x
            vmem_limit_bytes=32 * 1024 * 1024,     # explicit scoped-VMEM budget
        ),
    )(x2d, w1_2d, b1c, w2_2d, b2c, masks)

    return out2d.reshape(N, C, H, W)


def _reference(x_nchw, w1, b1, w2, b2):
    """Pure-JAX f32 reference matching PyTorch semantics (NCHW conv, same padding)."""
    dn = jax.lax.conv_dimension_numbers(x_nchw.shape, w1.shape, ("NCHW", "OIHW", "NCHW"))

    def conv2d(x, w, b):
        y = jax.lax.conv_general_dilated(x, w, (1, 1), [(PAD, PAD), (PAD, PAD)],
                                         dimension_numbers=dn)
        return y + b.reshape(1, -1, 1, 1)

    res = conv2d(x_nchw, w1, b1)
    res = jnp.maximum(res, 0.0)
    res = conv2d(res, w2, b2)
    return res + x_nchw


if __name__ == "__main__":
    # Small shapes consistent with ResBlock(conv, n_feat=4, kernel_size=3, bias=True)
    N, C, H, W = 2, 4, 16, 16

    key = jax.random.PRNGKey(0)
    kx, kw1, kb1, kw2, kb2 = jax.random.split(key, 5)

    x = jax.random.normal(kx, (N, C, H, W), dtype=jnp.float32)
    # Deterministic synthetic weights (PyTorch layout: Cout, Cin, K, K)
    fan_in = C * KSIZE * KSIZE
    bound = 1.0 / (fan_in ** 0.5)
    w1 = jax.random.uniform(kw1, (C, C, KSIZE, KSIZE), minval=-bound, maxval=bound)
    b1 = jax.random.uniform(kb1, (C,), minval=-bound, maxval=bound)
    w2 = jax.random.uniform(kw2, (C, C, KSIZE, KSIZE), minval=-bound, maxval=bound)
    b2 = jax.random.uniform(kb2, (C,), minval=-bound, maxval=bound)

    out = resblock_forward(x, w1, b1, w2, b2)
    out = jax.block_until_ready(out)

    ref = jax.block_until_ready(_reference(x, w1, b1, w2, b2))
    assert out.shape == (N, C, H, W)
    # Tolerance loosened vs a pure-f32 version because the MXU matmuls take bf16
    # inputs (f32 accumulation); observed error is well below these bounds.
    assert jnp.allclose(out, ref, atol=5e-2, rtol=5e-2), "mismatch vs reference"

    print("KERNEL_OK")
</pallas_src>

<mosaic_0001>
module attributes {stable_mosaic.version = 11 : i64} {
  func.func @_resblock_kernel(%arg0: i32, %arg1: memref<1x4x256xf32, #tpu.memory_space<vmem>>, %arg2: memref<4x36xbf16, #tpu.memory_space<vmem>>, %arg3: memref<4x1xf32, #tpu.memory_space<vmem>>, %arg4: memref<4x36xbf16, #tpu.memory_space<vmem>>, %arg5: memref<4x1xf32, #tpu.memory_space<vmem>>, %arg6: memref<36x256xf32, #tpu.memory_space<vmem>>, %arg7: memref<1x4x256xf32, #tpu.memory_space<vmem>>) attributes {dimension_semantics = [#tpu.dimension_semantics<parallel>], iteration_bounds = array<i64: 2>, scalar_prefetch = 0 : i64, scratch_operands = 0 : i64, tpu.core_type = #tpu.core_type<tc>, window_params = [{transform_indices = @transform_0, window_bounds = array<i64: 1, 4, 256>}, {pipeline_mode = #tpu.pipeline_mode<synchronous>, transform_indices = @transform_1, window_bounds = array<i64: 4, 36>}, {pipeline_mode = #tpu.pipeline_mode<synchronous>, transform_indices = @transform_2, window_bounds = array<i64: 4, 1>}, {pipeline_mode = #tpu.pipeline_mode<synchronous>, transform_indices = @transform_3, window_bounds = array<i64: 4, 36>}, {pipeline_mode = #tpu.pipeline_mode<synchronous>, transform_indices = @transform_4, window_bounds = array<i64: 4, 1>}, {pipeline_mode = #tpu.pipeline_mode<synchronous>, transform_indices = @transform_5, window_bounds = array<i64: 36, 256>}, {transform_indices = @transform_6, window_bounds = array<i64: 1, 4, 256>}]} {
    %c0 = arith.constant 0 : index
    %c0_0 = arith.constant 0 : index
    %c0_1 = arith.constant 0 : index
    %0 = vector.load %arg1[%c0, %c0_0, %c0_1] : memref<1x4x256xf32, #tpu.memory_space<vmem>>, vector<1x4x256xf32>
    %1 = vector.shape_cast %0 : vector<1x4x256xf32> to vector<4x256xf32>
    %c0_2 = arith.constant 0 : index
    %c0_3 = arith.constant 0 : index
    %2 = vector.load %arg6[%c0_2, %c0_3] : memref<36x256xf32, #tpu.memory_space<vmem>>, vector<36x256xf32>
    %c0_4 = arith.constant 0 : index
    %c0_5 = arith.constant 0 : index
    %3 = vector.load %arg2[%c0_4, %c0_5] : memref<4x36xbf16, #tpu.memory_space<vmem>>, vector<4x36xbf16>
    %c17_i32 = arith.constant 17 : i32
    %4 = tpu.dynamic_rotate %1 by %c17_i32 dim 1 : vector<4x256xf32>, i32 -> vector<4x256xf32>
    %c16_i32 = arith.constant 16 : i32
    %5 = tpu.dynamic_rotate %1 by %c16_i32 dim 1 : vector<4x256xf32>, i32 -> vector<4x256xf32>
    %c15_i32 = arith.constant 15 : i32
    %6 = tpu.dynamic_rotate %1 by %c15_i32 dim 1 : vector<4x256xf32>, i32 -> vector<4x256xf32>
    %c1_i32 = arith.constant 1 : i32
    %7 = tpu.dynamic_rotate %1 by %c1_i32 dim 1 : vector<4x256xf32>, i32 -> vector<4x256xf32>
    %c255_i32 = arith.constant 255 : i32
    %8 = tpu.dynamic_rotate %1 by %c255_i32 dim 1 : vector<4x256xf32>, i32 -> vector<4x256xf32>
    %c241_i32 = arith.constant 241 : i32
    %9 = tpu.dynamic_rotate %1 by %c241_i32 dim 1 : vector<4x256xf32>, i32 -> vector<4x256xf32>
    %c240_i32 = arith.constant 240 : i32
    %10 = tpu.dynamic_rotate %1 by %c240_i32 dim 1 : vector<4x256xf32>, i32 -> vector<4x256xf32>
    %c239_i32 = arith.constant 239 : i32
    %11 = tpu.dynamic_rotate %1 by %c239_i32 dim 1 : vector<4x256xf32>, i32 -> vector<4x256xf32>
    %12 = tpu.concatenate %4, %5, %6, %7, %1, %8, %9, %10, %11 in 0 : vector<4x256xf32>, vector<4x256xf32>, vector<4x256xf32>, vector<4x256xf32>, vector<4x256xf32>, vector<4x256xf32>, vector<4x256xf32>, vector<4x256xf32>, vector<4x256xf32> -> vector<36x256xf32>
    %13 = arith.mulf %12, %2 : vector<36x256xf32>
    %14 = arith.truncf %13 : vector<36x256xf32> to vector<36x256xbf16>
    %cst = arith.constant dense<0.000000e+00> : vector<4x256xf32>
    %15 = tpu.matmul %3, %14, %cst {dimension_numbers = #tpu.dot_dimension_numbers<[1], [0], [0], [1], [0, 0, 1, 1], [], []>} : vector<4x36xbf16>, vector<36x256xbf16>, vector<4x256xf32> -> vector<4x256xf32>
    %c0_6 = arith.constant 0 : index
    %c0_7 = arith.constant 0 : index
    %16 = vector.load %arg3[%c0_6, %c0_7] : memref<4x1xf32, #tpu.memory_space<vmem>>, vector<4x1xf32>
    %17 = vector.broadcast %16 : vector<4x1xf32> to vector<4x256xf32>
    %18 = arith.addf %15, %17 : vector<4x256xf32>
    %cst_8 = arith.constant 0.000000e+00 : f32
    %19 = vector.broadcast %cst_8 : f32 to vector<4x256xf32>
    %20 = arith.maximumf %18, %19 : vector<4x256xf32>
    %c0_9 = arith.constant 0 : index
    %c0_10 = arith.constant 0 : index
    %21 = vector.load %arg4[%c0_9, %c0_10] : memref<4x36xbf16, #tpu.memory_space<vmem>>, vector<4x36xbf16>
    %c17_i32_11 = arith.constant 17 : i32
    %22 = tpu.dynamic_rotate %20 by %c17_i32_11 dim 1 : vector<4x256xf32>, i32 -> vector<4x256xf32>
    %c16_i32_12 = arith.constant 16 : i32
    %23 = tpu.dynamic_rotate %20 by %c16_i32_12 dim 1 : vector<4x256xf32>, i32 -> vector<4x256xf32>
    %c15_i32_13 = arith.constant 15 : i32
    %24 = tpu.dynamic_rotate %20 by %c15_i32_13 dim 1 : vector<4x256xf32>, i32 -> vector<4x256xf32>
    %c1_i32_14 = arith.constant 1 : i32
    %25 = tpu.dynamic_rotate %20 by %c1_i32_14 dim 1 : vector<4x256xf32>, i32 -> vector<4x256xf32>
    %c255_i32_15 = arith.constant 255 : i32
    %26 = tpu.dynamic_rotate %20 by %c255_i32_15 dim 1 : vector<4x256xf32>, i32 -> vector<4x256xf32>
    %c241_i32_16 = arith.constant 241 : i32
    %27 = tpu.dynamic_rotate %20 by %c241_i32_16 dim 1 : vector<4x256xf32>, i32 -> vector<4x256xf32>
    %c240_i32_17 = arith.constant 240 : i32
    %28 = tpu.dynamic_rotate %20 by %c240_i32_17 dim 1 : vector<4x256xf32>, i32 -> vector<4x256xf32>
    %c239_i32_18 = arith.constant 239 : i32
    %29 = tpu.dynamic_rotate %20 by %c239_i32_18 dim 1 : vector<4x256xf32>, i32 -> vector<4x256xf32>
    %30 = tpu.concatenate %22, %23, %24, %25, %20, %26, %27, %28, %29 in 0 : vector<4x256xf32>, vector<4x256xf32>, vector<4x256xf32>, vector<4x256xf32>, vector<4x256xf32>, vector<4x256xf32>, vector<4x256xf32>, vector<4x256xf32>, vector<4x256xf32> -> vector<36x256xf32>
    %31 = arith.mulf %30, %2 : vector<36x256xf32>
    %32 = arith.truncf %31 : vector<36x256xf32> to vector<36x256xbf16>
    %cst_19 = arith.constant dense<0.000000e+00> : vector<4x256xf32>
    %33 = tpu.matmul %21, %32, %cst_19 {dimension_numbers = #tpu.dot_dimension_numbers<[1], [0], [0], [1], [0, 0, 1, 1], [], []>} : vector<4x36xbf16>, vector<36x256xbf16>, vector<4x256xf32> -> vector<4x256xf32>
    %c0_20 = arith.constant 0 : index
    %c0_21 = arith.constant 0 : index
    %34 = vector.load %arg5[%c0_20, %c0_21] : memref<4x1xf32, #tpu.memory_space<vmem>>, vector<4x1xf32>
    %35 = vector.broadcast %34 : vector<4x1xf32> to vector<4x256xf32>
    %36 = arith.addf %33, %35 : vector<4x256xf32>
    %37 = arith.addf %36, %1 : vector<4x256xf32>
    %c0_22 = arith.constant 0 : index
    %c0_23 = arith.constant 0 : index
    %c0_24 = arith.constant 0 : index
    %38 = vector.load %arg7[%c0_22, %c0_23, %c0_24] : memref<1x4x256xf32, #tpu.memory_space<vmem>>, vector<1x4x256xf32>
    %39 = vector.shape_cast %38 : vector<1x4x256xf32> to vector<4x256xf32>
    %40 = vector.shape_cast %37 : vector<4x256xf32> to vector<1x4x256xf32>
    tpu.vector_store %arg7[%c0_22, %c0_23, %c0_24], %40 {strides = array<i32>} : memref<1x4x256xf32, #tpu.memory_space<vmem>>, vector<1x4x256xf32>,
    return
  }
  func.func @transform_0(%arg0: i32) -> (i32, i32, i32) {
    %c0_i32 = arith.constant 0 : i32
    %c0_i32_0 = arith.constant 0 : i32
    %c0_i32_1 = arith.constant 0 : i32
    return %arg0, %c0_i32, %c0_i32_0 : i32, i32, i32
  }
  func.func @transform_1(%arg0: i32) -> (i32, i32) {
    %c0_i32 = arith.constant 0 : i32
    %c0_i32_0 = arith.constant 0 : i32
    %c0_i32_1 = arith.constant 0 : i32
    return %c0_i32, %c0_i32_0 : i32, i32
  }
  func.func @transform_2(%arg0: i32) -> (i32, i32) {
    %c0_i32 = arith.constant 0 : i32
    %c0_i32_0 = arith.constant 0 : i32
    %c0_i32_1 = arith.constant 0 : i32
    return %c0_i32, %c0_i32_0 : i32, i32
  }
  func.func @transform_3(%arg0: i32) -> (i32, i32) {
    %c0_i32 = arith.constant 0 : i32
    %c0_i32_0 = arith.constant 0 : i32
    %c0_i32_1 = arith.constant 0 : i32
    return %c0_i32, %c0_i32_0 : i32, i32
  }
  func.func @transform_4(%arg0: i32) -> (i32, i32) {
    %c0_i32 = arith.constant 0 : i32
    %c0_i32_0 = arith.constant 0 : i32
    %c0_i32_1 = arith.constant 0 : i32
    return %c0_i32, %c0_i32_0 : i32, i32
  }
  func.func @transform_5(%arg0: i32) -> (i32, i32) {
    %c0_i32 = arith.constant 0 : i32
    %c0_i32_0 = arith.constant 0 : i32
    %c0_i32_1 = arith.constant 0 : i32
    return %c0_i32, %c0_i32_0 : i32, i32
  }
  func.func @transform_6(%arg0: i32) -> (i32, i32, i32) {
    %c0_i32 = arith.constant 0 : i32
    %c0_i32_0 = arith.constant 0 : i32
    %c0_i32_1 = arith.constant 0 : i32
    return %arg0, %c0_i32, %c0_i32_0 : i32, i32, i32
  }
}

</mosaic_0001>

<llo_original>
// kernel: tpu_custom_call.1
$region0: #{tpu_custom_call.1}
  #allocation0 [shape = 'u32[]', space=smem, size = 0x4, offset = 0x4, fixed_abs, tag = 'smem constant byte address 0x4 - core index']
  #allocation1 [shape = 'u32[144,128]{1,0:T(1,128)}', space=vmem, size = 0x12000, scoped, tag = 'internal scratch']
  %s0 = inlined_call_operand.hbm [shape: f32[2,4,256], index: 0, kind: input, shape index: {}]
  %s1 = inlined_call_operand.vmem [shape: bf16[4,36], index: 1, kind: input, shape index: {}]
  %s2 = inlined_call_operand.vmem [shape: f32[4,1], index: 2, kind: input, shape index: {}]
  %s3 = inlined_call_operand.vmem [shape: bf16[4,36], index: 3, kind: input, shape index: {}]
  %s4 = inlined_call_operand.vmem [shape: f32[4,1], index: 4, kind: input, shape index: {}]
  %s5 = inlined_call_operand.hbm [shape: f32[36,256], index: 5, kind: input, shape index: {}]
  %s6 = inlined_call_operand.hbm [shape: f32[2,4,256], index: 6, kind: output, shape index: {}]
  %s7 = sld [smem:[#allocation0]]
  $region65: #{tpu_custom_call.1} parent=0
    _
  %s9 = ssub.s32 1, %s7
  %s10 = scalar_select 0, %s9, %s7
  $region1: #{tpu_custom_call.1} parent=0
    #allocation2 [shape = 'u8[8192]{0}', space=vmem, size = 0x2000, scoped, tag = 'input window, operand 0']
    #allocation3 [shape = 's32[2]{0}', space=sflag, size = 0x8, scoped, tag = 'scoped memory for tpu_custom_call.1']
    #allocation4 [shape = 's32[2]{0}', space=sflag, size = 0x8, scoped, tag = 'scoped memory for tpu_custom_call.1']
    #allocation5 [shape = 'u8[40960]{0}', space=vmem, size = 0xa000, scoped, tag = 'input window, operand 5, single buffered']
    #allocation6 [shape = 's32[1]{0}', space=sflag, size = 0x4, scoped, tag = 'scoped memory for tpu_custom_call.1']
    #allocation7 [shape = 'u8[8192]{0}', space=vmem, size = 0x2000, scoped, tag = 'output window, operand 0']
    %11 = vsyncpa [#allocation3], 0
    %s12 = scalar_lea.sflag [#allocation3], 1
    %13 = vsyncpa %s12, 0
    %14 = vsyncpa [#allocation6], 0
    %15 = vsyncpa [#allocation4], 0
    %s16 = scalar_lea.sflag [#allocation4], 1
    %17 = vsyncpa %s16, 0
    loop: start=0, step=1, limit=4
    $region2: #{tpu_custom_call.1} parent=1 // loop_pre_header
      _
    $region3: #{tpu_custom_call.1} parent=1 // loop_header
      %s19 = sphi 0, %s23
      %p20 = scmp.ge.s32.totalorder %s19, 4
      %s29 = sphi 0, %s31
      %s32 = sphi 0, %s29
      %s33 = sphi 0, %s32
      %s49 = sphi 0, %s33
      %s53 = sphi 0, %s53
      %s55 = sphi 0, %s53
      %s56 = sphi 0, %s55
      %s70 = sphi 0, %s56
      %s74 = sphi 0, %s74
      %s76 = sphi 0, %s74
      %s77 = sphi 0, %s76
      %s91 = sphi 0, %s77
      %s95 = sphi 0, %s95
      %s97 = sphi 0, %s95
      %s98 = sphi 0, %s97
      %s112 = sphi 0, %s98
      %s116 = sphi 0, %s116
      %s118 = sphi 0, %s116
      %s119 = sphi 0, %s118
      %s133 = sphi 0, %s119
      %s137 = sphi 0, %s137
      %s139 = sphi 0, %s137
      %s140 = sphi 0, %s139
      %s154 = sphi 0, %s140
      %s160 = sphi 0, %s162
      %s163 = sphi 0, %s160
      %s164 = sphi 0, %s163
      %s180 = sphi 0, %s164
    $region4: #{tpu_custom_call.1} parent=1 // loop_header_branch
      %22 = sbr.rel (%p20) target = $region8
    $region5: #{tpu_custom_call.1} parent=1 // loop_body
      %s24 = ssub.s32 %s19, 1
      %s25 = ssub.s32 %s19, 2
      %s26 = sadd.s32 %s19, 1
      %s27 = ssub.s32 %s19, %s26
      %p28 = scmp.eq.s32.totalorder %s27, 0
      %s30 = sadd.s32 %s29, 1
      %s31 = scalar_select %p28, %s29, %s30
      %p34 = pneg %p28
      %p35 = scmp.eq.s32.totalorder %s19, 1
      %p36 = por %p34, %p35
      %p37 = scmp.ne.s32.totalorder %s29, %s32
      %p38 = scmp.eq.s32.totalorder %s19, 0
      %p39 = por %p37, %p38
      %p40 = scmp.ne.s32.totalorder %s29, %s32
      %p41 = scmp.eq.s32.totalorder %s24, 1
      %p42 = por %p40, %p41
      %p43 = scmp.ne.s32.totalorder %s32, %s33
      %p44 = scmp.eq.s32.totalorder %s24, 0
      %p45 = por %p43, %p44
      %p46 = scmp.ne.s32.totalorder %s32, %s33
      %p47 = scmp.eq.s32.totalorder %s25, 1
      %p48 = por %p46, %p47
      %p50 = scmp.ne.s32.totalorder %s33, %s49
      %p51 = scmp.eq.s32.totalorder %s25, 0
      %p52 = por %p50, %p51
      %s54 = sadd.s32 %s53, 1
      %p57 = scmp.eq.s32.totalorder %s19, 1
      %p58 = scmp.ne.s32.totalorder %s53, %s55
      %p59 = scmp.eq.s32.totalorder %s19, 0
      %p60 = por %p58, %p59
      %p61 = scmp.ne.s32.totalorder %s53, %s55
      %p62 = scmp.eq.s32.totalorder %s24, 1
      %p63 = por %p61, %p62
      %p64 = scmp.ne.s32.totalorder %s55, %s56
      %p65 = scmp.eq.s32.totalorder %s24, 0
      %p66 = por %p64, %p65
      %p67 = scmp.ne.s32.totalorder %s55, %s56
      %p68 = scmp.eq.s32.totalorder %s25, 1
      %p69 = por %p67, %p68
      %p71 = scmp.ne.s32.totalorder %s56, %s70
      %p72 = scmp.eq.s32.totalorder %s25, 0
      %p73 = por %p71, %p72
      %s75 = sadd.s32 %s74, 1
      %p78 = scmp.eq.s32.totalorder %s19, 1
      %p79 = scmp.ne.s32.totalorder %s74, %s76
      %p80 = scmp.eq.s32.totalorder %s19, 0
      %p81 = por %p79, %p80
      %p82 = scmp.ne.s32.totalorder %s74, %s76
      %p83 = scmp.eq.s32.totalorder %s24, 1
      %p84 = por %p82, %p83
      %p85 = scmp.ne.s32.totalorder %s76, %s77
      %p86 = scmp.eq.s32.totalorder %s24, 0
      %p87 = por %p85, %p86
      %p88 = scmp.ne.s32.totalorder %s76, %s77
      %p89 = scmp.eq.s32.totalorder %s25, 1
      %p90 = por %p88, %p89
      %p92 = scmp.ne.s32.totalorder %s77, %s91
      %p93 = scmp.eq.s32.totalorder %s25, 0
      %p94 = por %p92, %p93
      %s96 = sadd.s32 %s95, 1
      %p99 = scmp.eq.s32.totalorder %s19, 1
      %p100 = scmp.ne.s32.totalorder %s95, %s97
      %p101 = scmp.eq.s32.totalorder %s19, 0
      %p102 = por %p100, %p101
      %p103 = scmp.ne.s32.totalorder %s95, %s97
      %p104 = scmp.eq.s32.totalorder %s24, 1
      %p105 = por %p103, %p104
      %p106 = scmp.ne.s32.totalorder %s97, %s98
      %p107 = scmp.eq.s32.totalorder %s24, 0
      %p108 = por %p106, %p107
      %p109 = scmp.ne.s32.totalorder %s97, %s98
      %p110 = scmp.eq.s32.totalorder %s25, 1
      %p111 = por %p109, %p110
      %p113 = scmp.ne.s32.totalorder %s98, %s112
      %p114 = scmp.eq.s32.totalorder %s25, 0
      %p115 = por %p113, %p114
      %s117 = sadd.s32 %s116, 1
      %p120 = scmp.eq.s32.totalorder %s19, 1
      %p121 = scmp.ne.s32.totalorder %s116, %s118
      %p122 = scmp.eq.s32.totalorder %s19, 0
      %p123 = por %p121, %p122
      %p124 = scmp.ne.s32.totalorder %s116, %s118
      %p125 = scmp.eq.s32.totalorder %s24, 1
      %p126 = por %p124, %p125
      %p127 = scmp.ne.s32.totalorder %s118, %s119
      %p128 = scmp.eq.s32.totalorder %s24, 0
      %p129 = por %p127, %p128
      %p130 = scmp.ne.s32.totalorder %s118, %s119
      %p131 = scmp.eq.s32.totalorder %s25, 1
      %p132 = por %p130, %p131
      %p134 = scmp.ne.s32.totalorder %s119, %s133
      %p135 = scmp.eq.s32.totalorder %s25, 0
      %p136 = por %p134, %p135
      %s138 = sadd.s32 %s137, 1
      %p141 = scmp.eq.s32.totalorder %s19, 1
      %p142 = scmp.ne.s32.totalorder %s137, %s139
      %p143 = scmp.eq.s32.totalorder %s19, 0
      %p144 = por %p142, %p143
      %p145 = scmp.ne.s32.totalorder %s137, %s139
      %p146 = scmp.eq.s32.totalorder %s24, 1
      %p147 = por %p145, %p146
      %p148 = scmp.ne.s32.totalorder %s139, %s140
      %p149 = scmp.eq.s32.totalorder %s24, 0
      %p150 = por %p148, %p149
      %p151 = scmp.ne.s32.totalorder %s139, %s140
      %p152 = scmp.eq.s32.totalorder %s25, 1
      %p153 = por %p151, %p152
      %p155 = scmp.ne.s32.totalorder %s140, %s154
      %p156 = scmp.eq.s32.totalorder %s25, 0
      %p157 = por %p155, %p156
      %s158 = ssub.s32 %s19, %s26
      %p159 = scmp.eq.s32.totalorder %s158, 0
      %s161 = sadd.s32 %s160, 1
      %s162 = scalar_select %p159, %s160, %s161
      %p165 = pneg %p159
      %p166 = scmp.eq.s32.totalorder %s19, 1
      %p167 = por %p165, %p166
      %p168 = scmp.ne.s32.totalorder %s160, %s163
      %p169 = scmp.eq.s32.totalorder %s19, 0
      %p170 = por %p168, %p169
      %p171 = scmp.ne.s32.totalorder %s160, %s163
      %p172 = scmp.eq.s32.totalorder %s24, 1
      %p173 = por %p171, %p172
      %p174 = scmp.ne.s32.totalorder %s163, %s164
      %p175 = scmp.eq.s32.totalorder %s24, 0
      %p176 = por %p174, %p175
      %p177 = scmp.ne.s32.totalorder %s163, %s164
      %p178 = scmp.eq.s32.totalorder %s25, 1
      %p179 = por %p177, %p178
      %p181 = scmp.ne.s32.totalorder %s164, %s180
      %p182 = scmp.eq.s32.totalorder %s25, 0
      %p183 = por %p181, %p182
      %p184 = scmp.le.s32.totalorder 1, %s19
      %p185 = scmp.lt.s32.totalorder %s19, 3
      %p186 = pnand %p184, %p185
      %p187 = pneg %p186
      // Predicated region
      $region9: #{tpu_custom_call.1} parent=5 // pred_check
        _
      $region10: #{tpu_custom_call.1} parent=5 // pred_check_branch
        %189 = sbr.rel (%p186) target = $region12
      $region11: #{tpu_custom_call.1} parent=5 // pred_region
        %s190 = ssub.s32 %s19, 1
        // Predicated region
        $region13: #{tpu_custom_call.1} parent=11 // pred_check
          %p191 = pneg %p66
        $region14: #{tpu_custom_call.1} parent=11 // pred_check_branch
          %193 = sbr.rel (%p191) target = $region16
        $region15: #{tpu_custom_call.1} parent=11 // pred_region
          _
        $region16: #{tpu_custom_call.1} parent=11 // pred_fallthru
          _
        // Predicated region
        $region17: #{tpu_custom_call.1} parent=11 // pred_check
          %p194 = pneg %p87
        $region18: #{tpu_custom_call.1} parent=11 // pred_check_branch
          %196 = sbr.rel (%p194) target = $region20
        $region19: #{tpu_custom_call.1} parent=11 // pred_region
          _
        $region20: #{tpu_custom_call.1} parent=11 // pred_fallthru
          _
        // Predicated region
        $region21: #{tpu_custom_call.1} parent=11 // pred_check
          %p197 = pneg %p108
        $region22: #{tpu_custom_call.1} parent=11 // pred_check_branch
          %199 = sbr.rel (%p197) target = $region24
        $region23: #{tpu_custom_call.1} parent=11 // pred_region
          _
        $region24: #{tpu_custom_call.1} parent=11 // pred_fallthru
          _
        // Predicated region
        $region25: #{tpu_custom_call.1} parent=11 // pred_check
          %p200 = pneg %p129
        $region26: #{tpu_custom_call.1} parent=11 // pred_check_branch
          %202 = sbr.rel (%p200) target = $region28
        $region27: #{tpu_custom_call.1} parent=11 // pred_region
          _
        $region28: #{tpu_custom_call.1} parent=11 // pred_fallthru
          _
        // Predicated region
        $region29: #{tpu_custom_call.1} parent=11 // pred_check
          %p203 = pneg %p150
        $region30: #{tpu_custom_call.1} parent=11 // pred_check_branch
          %205 = sbr.rel (%p203) target = $region32
        $region31: #{tpu_custom_call.1} parent=11 // pred_region
          %s207 = ssub.s32 1280, 1280
          %208 = vsyncadd [#allocation6], %s207
          %s209 = sshll.u32 [#allocation5], 4
          %s210 = int_to_ptr.vmem [resolvable:$true] %s209
          %215 = dma.hbm_to_vmem [thread:$0]  %s5, 1280, %s210, [#allocation6], 256, 256, 16
        $region32: #{tpu_custom_call.1} parent=11 // pred_fallthru
          _
      $region12: #{tpu_custom_call.1} parent=5 // pred_fallthru
        _
      %p216 = scmp.lt.s32.totalorder %s19, 2
      // Predicated region
      $region33: #{tpu_custom_call.1} parent=5 // pred_check
        %p217 = pneg %p216
      $region34: #{tpu_custom_call.1} parent=5 // pred_check_branch
        %219 = sbr.rel (%p217) target = $region36
      $region35: #{tpu_custom_call.1} parent=5 // pred_region
        // Predicated region
        $region37: #{tpu_custom_call.1} parent=35 // pred_check
          %p220 = pneg %p39
        $region38: #{tpu_custom_call.1} parent=35 // pred_check_branch
          %222 = sbr.rel (%p220) target = $region40
        $region39: #{tpu_custom_call.1} parent=35 // pred_region
          %s223 = sand.u32 %s29, 1
          %s224 = scalar_lea.sflag [#allocation3], %s223
          %s225 = sand.u32 %s29, 1
          %s226 = smul.addr %s225, 8
          %s227 = scalar_lea.vmem [#allocation2], %s226
          %s229 = ssub.s32 128, 128
          %230 = vsyncadd %s224, %s229
          %s231 = smul.addr %s19, 2
          %s232 = smul.addr %s231, 64
          %s233 = scalar_lea.hbm %s0, %s232
          %s235 = sshll.u32 %s227, 4
          %s236 = int_to_ptr.vmem [resolvable:$true] %s235
          %238 = dma.hbm_to_vmem [thread:$0]  %s233, 128, %s236, %s224
        $region40: #{tpu_custom_call.1} parent=35 // pred_fallthru
          _
      $region36: #{tpu_custom_call.1} parent=5 // pred_fallthru
        _
      %p239 = scmp.le.s32.totalorder 1, %s19
      %p240 = scmp.lt.s32.totalorder %s19, 3
      %p241 = pnand %p239, %p240
      %p242 = pneg %p241
      // Predicated region
      $region41: #{tpu_custom_call.1} parent=5 // pred_check
        _
      $region42: #{tpu_custom_call.1} parent=5 // pred_check_branch
        %244 = sbr.rel (%p241) target = $region44
      $region43: #{tpu_custom_call.1} parent=5 // pred_region
        %s245 = ssub.s32 %s19, 1
        %s246 = sand.u32 %s32, 1
        %s247 = scalar_lea.sflag [#allocation3], %s246
        %s248 = sand.u32 %s32, 1
        %s249 = smul.addr %s248, 8
        %s250 = scalar_lea.vmem [#allocation2], %s249
        // Predicated region
        $region45: #{tpu_custom_call.1} parent=43 // pred_check
          %p251 = pneg %p45
        $region46: #{tpu_custom_call.1} parent=43 // pred_check_branch
          %253 = sbr.rel (%p251) target = $region48
        $region47: #{tpu_custom_call.1} parent=43 // pred_region
          %254 = dma.done %s247, 128
        $region48: #{tpu_custom_call.1} parent=43 // pred_fallthru
          _
        // Predicated region
        $region49: #{tpu_custom_call.1} parent=43 // pred_check
          %p255 = pneg %p150
        $region50: #{tpu_custom_call.1} parent=43 // pred_check_branch
          %257 = sbr.rel (%p255) target = $region52
        $region51: #{tpu_custom_call.1} parent=43 // pred_region
          %258 = dma.done [#allocation6], 1280
        $region52: #{tpu_custom_call.1} parent=43 // pred_fallthru
          _
        %s259 = sand.u32 %s32, 1
        %s260 = scalar_lea.sflag [#allocation3], %s259
        %s261 = sand.u32 %s32, 1
        %s262 = smul.addr %s261, 8
        %s263 = scalar_lea.vmem [#allocation2], %s262
        %p264 = pneg %p45
        %p265 = pneg %p42
        %p266 = pneg %p66
        %p267 = pneg %p63
        %p268 = pneg %p87
        %p269 = pneg %p84
        %p270 = pneg %p108
        %p271 = pneg %p105
        %p272 = pneg %p129
        %p273 = pneg %p126
        %p274 = pneg %p150
        %p275 = pneg %p147
        %p276 = pneg %p176
        %p277 = pneg %p173
        %s278 = sand.u32 %s163, 1
        %s279 = scalar_lea.sflag [#allocation4], %s278
        %s280 = sand.u32 %s163, 1
        %s281 = smul.addr %s280, 8
        %s282 = scalar_lea.vmem [#allocation7], %s281
        %v284 = vld [vmem:[%s250] sm:$0xff]
        %v285 = vld [vmem:[#allocation5] sm:$0xff]
        %v286 = vld [vmem:[#allocation5 + $0x8] sm:$0xff]
        %v287 = vld [vmem:[#allocation5 + $0x10] sm:$0xff]
        %v288 = vld [vmem:[#allocation5 + $0x18] sm:$0xff]
        %v289 = vld [vmem:[#allocation5 + $0x20] sm:$0xff]
        %v290 = vld [vmem:[#allocation5 + $0x28] sm:$0xff]
        %v291 = vld [vmem:[#allocation5 + $0x30] sm:$0xff]
        %v292 = vld [vmem:[#allocation5 + $0x38] sm:$0xff]
        %v293 = vld [vmem:[#allocation5 + $0x40] sm:$0xf]
        %v294 = vld [vmem:[#allocation5 + $0x48] sm:$0xf]
        %v295 = vld [vmem:[%s1] sm:$0x3]
        %v297 = vcombine.high %v284, %v284
        %299 = vrot.lane.b32.xlu0 %v284, 17
        %v300 = vpop.permute.xlu0 %299
        %301 = vrot.lane.b32.xlu0 %v297, 17
        %v302 = vpop.permute.xlu0 %301
        %v303 = vlaneseq
        %v304 = vand.u32 %v303, 127
        %vm305 = vcmp.lt.s32.totalorder %v304, 17
        %v306 = vsel %vm305, %v300, %v302
        %v307 = vsel %vm305, %v302, %v300
        %308 = vrot.lane.b32.xlu0 %v284, 16
        %v309 = vpop.permute.xlu0 %308
        %310 = vrot.lane.b32.xlu0 %v297, 16
        %v311 = vpop.permute.xlu0 %310
        %vm312 = vcmp.lt.s32.totalorder %v304, 16
        %v313 = vsel %vm312, %v309, %v311
        %v314 = vsel %vm312, %v311, %v309
        %315 = vrot.lane.b32.xlu0 %v284, 15
        %v316 = vpop.permute.xlu0 %315
        %317 = vrot.lane.b32.xlu0 %v297, 15
        %v318 = vpop.permute.xlu0 %317
        %vm319 = vcmp.lt.s32.totalorder %v304, 15
        %v320 = vsel %vm319, %v316, %v318
        %v321 = vsel %vm319, %v318, %v316
        %322 = vrot.lane.b32.xlu0 %v284, 1
        %v323 = vpop.permute.xlu0 %322
        %324 = vrot.lane.b32.xlu0 %v297, 1
        %v325 = vpop.permute.xlu0 %324
        %vm326 = vcmp.lt.s32.totalorder %v304, 1
        %v327 = vsel %vm326, %v323, %v325
        %v328 = vsel %vm326, %v325, %v323
        %329 = vrot.lane.b32.xlu0 %v284, 127
        %v330 = vpop.permute.xlu0 %329
        %331 = vrot.lane.b32.xlu0 %v297, 127
        %v332 = vpop.permute.xlu0 %331
        %vm333 = vcmp.lt.s32.totalorder %v304, 127
        %v334 = vsel %vm333, %v330, %v332
        %v335 = vsel %vm333, %v332, %v330
        %336 = vrot.lane.b32.xlu0 %v284, 113
        %v337 = vpop.permute.xlu0 %336
        %338 = vrot.lane.b32.xlu0 %v297, 113
        %v339 = vpop.permute.xlu0 %338
        %vm340 = vcmp.lt.s32.totalorder %v304, 113
        %v341 = vsel %vm340, %v337, %v339
        %v342 = vsel %vm340, %v339, %v337
        %343 = vrot.lane.b32.xlu0 %v284, 112
        %v344 = vpop.permute.xlu0 %343
        %345 = vrot.lane.b32.xlu0 %v297, 112
        %v346 = vpop.permute.xlu0 %345
        %vm347 = vcmp.lt.s32.totalorder %v304, 112
        %v348 = vsel %vm347, %v344, %v346
        %v349 = vsel %vm347, %v346, %v344
        %350 = vrot.lane.b32.xlu0 %v284, 111
        %v351 = vpop.permute.xlu0 %350
        %352 = vrot.lane.b32.xlu0 %v297, 111
        %v353 = vpop.permute.xlu0 %352
        %vm354 = vcmp.lt.s32.totalorder %v304, 111
        %v355 = vsel %vm354, %v351, %v353
        %v356 = vsel %vm354, %v353, %v351
        %v359 = vrot.slane %v314, 4
        %v360 = vrot.slane %v313, 4
        %v365 = vrot.slane %v328, 4
        %v366 = vrot.slane %v327, 4
        %v371 = vrot.slane %v334, 4
        %v372 = vrot.slane %v335, 4
        %v377 = vrot.slane %v348, 4
        %v378 = vrot.slane %v349, 4
        %vm381 = vcmask 1043456
        %v382 = vsel %vm381, %v307, %v359
        %v383 = vsel %vm381, %v306, %v360
        %v384 = vsel %vm381, %v321, %v365
        %v385 = vsel %vm381, %v320, %v366
        %v386 = vsel %vm381, %v284, %v371
        %v387 = vsel %vm381, %v297, %v372
        %v388 = vsel %vm381, %v341, %v377
        %v389 = vsel %vm381, %v342, %v378
        %v390 = vmul.f32 %v382, %v285
        %v391 = vmul.f32 %v383, %v286
        %v392 = vmul.f32 %v384, %v287
        %v393 = vmul.f32 %v385, %v288
        %v394 = vmul.f32 %v386, %v289
        %v395 = vmul.f32 %v387, %v290
        %v396 = vmul.f32 %v388, %v291
        %v397 = vmul.f32 %v389, %v292
        %v398 = vmul.f32 %v355, %v293
        %v399 = vmul.f32 %v356, %v294
        %v400 = vpack.c.bf16 %v392, %v390
        %v401 = vpack.c.bf16 %v393, %v391
        %v402 = vpack.c.bf16 %v396, %v394
        %v403 = vpack.c.bf16 %v397, %v395
        %v404 = vpack.c.bf16 %v398, %v398
        %v405 = vpack.c.bf16 %v399, %v399
        %v406 = vld [vmem:[%s2] sm:$0xf]
        %408 = vset.pattern.permute.xlu0 0
        %409 = vperm.xlu0 %408, %v406
        %v410 = vpop.permute.xlu0 %409
        %vm412 = vcmask 293888
        %v414 = vsel %vm412, %v295, 0
        %vm416 = vcmask 1041408
        %v418 = vsel %vm416, %v404, 0
        %v421 = vsel %vm416, %v405, 0
        %423 = vmatprep.subr.bf16.mxu0 %v401
        %424 = vmatpush1.bf16.msra.mxu0 %v400
        %425 = vmatprep.subr.bf16.mxu0 %v403
        %426 = vmatpush1.bf16.msra.mxu0 %v402
        %427 = vmatprep.subr.bf16.mxu0 %v421
        %428 = vmatpush1.bf16.msra.mxu0 %v418
        %429 = vmatprep.subr.bf16.mxu0 0
        %430 = vmatpush1.bf16.msra.mxu0 0
        %431 = vmatprep.subr.bf16.mxu0 0
        %432 = vmatpush1.bf16.msra.mxu0 0
        %433 = vmatprep.subr.bf16.mxu0 0
        %434 = vmatpush1.bf16.msra.mxu0 0
        %435 = vmatprep.subr.bf16.mxu0 0
        %436 = vmatpush1.bf16.msra.mxu0 0
        %437 = vmatprep.subr.bf16.mxu0 0
        %438 = vmatpush1.bf16.msra.mxu0 0
        %439 = vmatprep.subr.bf16.mxu0 0
        %440 = vmatpush1.bf16.msra.mxu0 0
        %441 = vmatprep.subr.bf16.mxu0 0
        %442 = vmatpush1.bf16.msra.mxu0 0
        %443 = vmatprep.subr.bf16.mxu0 0
        %444 = vmatpush1.bf16.msra.mxu0 0
        %445 = vmatprep.subr.bf16.mxu0 0
        %446 = vmatpush1.bf16.msra.mxu0 0
        %447 = vmatprep.subr.bf16.mxu0 0
        %448 = vmatpush1.bf16.msra.mxu0 0
        %449 = vmatprep.subr.bf16.mxu0 0
        %450 = vmatpush1.bf16.msra.mxu0 0
        %451 = vmatprep.subr.bf16.mxu0 0
        %452 = vmatpush1.bf16.msra.mxu0 0
        %453 = vmatprep.subr.bf16.mxu0 0
        %454 = vmatpush1.bf16.msra.mxu0 0
        %455 = vmatprep.mubr.bf16.mxu0 0
        %456 = vmatmul.mubr.bf16.gmra.mrb[0].mxu0 %v414
        %v457 = vpop.f32.mrb[0].mxu0
        %v458 = vadd.f32 %v410, %v457
        %v459 = vpop.f32.mrb[0].mxu0
        %v460 = vadd.f32 %v410, %v459
        %v461 = vpop.f32.mrb[0].mxu0
        %v462 = vpop.f32.mrb[0].mxu0
        %463 = vdwg.mxu0
        %v464 = vmax.f32 %v458, 0.0
        %v465 = vmax.f32 %v460, 0.0
        %v466 = vld [vmem:[%s3] sm:$0x3]
        %467 = vrot.lane.b32.xlu0 %v464, 17
        %v468 = vpop.permute.xlu0 %467
        %469 = vrot.lane.b32.xlu0 %v465, 17
        %v470 = vpop.permute.xlu0 %469
        %v471 = vsel %vm305, %v468, %v470
        %v472 = vsel %vm305, %v470, %v468
        %473 = vrot.lane.b32.xlu0 %v464, 16
        %v474 = vpop.permute.xlu0 %473
        %475 = vrot.lane.b32.xlu0 %v465, 16
        %v476 = vpop.permute.xlu0 %475
        %v477 = vsel %vm312, %v474, %v476
        %v478 = vsel %vm312, %v476, %v474
        %479 = vrot.lane.b32.xlu0 %v464, 15
        %v480 = vpop.permute.xlu0 %479
        %481 = vrot.lane.b32.xlu0 %v465, 15
        %v482 = vpop.permute.xlu0 %481
        %v483 = vsel %vm319, %v480, %v482
        %v484 = vsel %vm319, %v482, %v480
        %485 = vrot.lane.b32.xlu0 %v464, 1
        %v486 = vpop.permute.xlu0 %485
        %487 = vrot.lane.b32.xlu0 %v465, 1
        %v488 = vpop.permute.xlu0 %487
        %v489 = vsel %vm326, %v486, %v488
        %v490 = vsel %vm326, %v488, %v486
        %491 = vrot.lane.b32.xlu0 %v464, 127
        %v492 = vpop.permute.xlu0 %491
        %493 = vrot.lane.b32.xlu0 %v465, 127
        %v494 = vpop.permute.xlu0 %493
        %v495 = vsel %vm333, %v492, %v494
        %v496 = vsel %vm333, %v494, %v492
        %497 = vrot.lane.b32.xlu0 %v464, 113
        %v498 = vpop.permute.xlu0 %497
        %499 = vrot.lane.b32.xlu0 %v465, 113
        %v500 = vpop.permute.xlu0 %499
        %v501 = vsel %vm340, %v498, %v500
        %v502 = vsel %vm340, %v500, %v498
        %503 = vrot.lane.b32.xlu0 %v464, 112
        %v504 = vpop.permute.xlu0 %503
        %505 = vrot.lane.b32.xlu0 %v465, 112
        %v506 = vpop.permute.xlu0 %505
        %v507 = vsel %vm347, %v504, %v506
        %v508 = vsel %vm347, %v506, %v504
        %509 = vrot.lane.b32.xlu0 %v464, 111
        %v510 = vpop.permute.xlu0 %509
        %511 = vrot.lane.b32.xlu0 %v465, 111
        %v512 = vpop.permute.xlu0 %511
        %v513 = vsel %vm354, %v510, %v512
        %v514 = vsel %vm354, %v512, %v510
        %v517 = vrot.slane %v478, 4
        %v518 = vrot.slane %v477, 4
        %v523 = vrot.slane %v490, 4
        %v524 = vrot.slane %v489, 4
        %v529 = vrot.slane %v495, 4
        %v530 = vrot.slane %v496, 4
        %v535 = vrot.slane %v507, 4
        %v536 = vrot.slane %v508, 4
        %v539 = vsel %vm381, %v472, %v517
        %v540 = vsel %vm381, %v471, %v518
        %v541 = vsel %vm381, %v484, %v523
        %v542 = vsel %vm381, %v483, %v524
        %v543 = vsel %vm381, %v464, %v529
        %v544 = vsel %vm381, %v465, %v530
        %v545 = vsel %vm381, %v501, %v535
        %v546 = vsel %vm381, %v502, %v536
        %v547 = vmul.f32 %v539, %v285
        %v548 = vmul.f32 %v540, %v286
        %v549 = vmul.f32 %v541, %v287
        %v550 = vmul.f32 %v542, %v288
        %v551 = vmul.f32 %v543, %v289
        %v552 = vmul.f32 %v544, %v290
        %v553 = vmul.f32 %v545, %v291
        %v554 = vmul.f32 %v546, %v292
        %v555 = vmul.f32 %v513, %v293
        %v556 = vmul.f32 %v514, %v294
        %v557 = vpack.c.bf16 %v549, %v547
        %v558 = vpack.c.bf16 %v550, %v548
        %v559 = vpack.c.bf16 %v553, %v551
        %v560 = vpack.c.bf16 %v554, %v552
        %v561 = vpack.c.bf16 %v555, %v555
        %v562 = vpack.c.bf16 %v556, %v556
        %v563 = vld [vmem:[%s4] sm:$0xf]
        %565 = vset.pattern.permute.xlu0 0
        %566 = vperm.xlu0 %565, %v563
        %v567 = vpop.permute.xlu0 %566
        %v570 = vsel %vm412, %v466, 0
        %v573 = vsel %vm416, %v561, 0
        %v576 = vsel %vm416, %v562, 0
        %578 = vmatprep.subr.bf16.mxu0 %v558
        %579 = vmatpush1.bf16.msra.mxu0 %v557
        %580 = vmatprep.subr.bf16.mxu0 %v560
        %581 = vmatpush1.bf16.msra.mxu0 %v559
        %582 = vmatprep.subr.bf16.mxu0 %v576
        %583 = vmatpush1.bf16.msra.mxu0 %v573
        %584 = vmatprep.subr.bf16.mxu0 0
        %585 = vmatpush1.bf16.msra.mxu0 0
        %586 = vmatprep.subr.bf16.mxu0 0
        %587 = vmatpush1.bf16.msra.mxu0 0
        %588 = vmatprep.subr.bf16.mxu0 0
        %589 = vmatpush1.bf16.msra.mxu0 0
        %590 = vmatprep.subr.bf16.mxu0 0
        %591 = vmatpush1.bf16.msra.mxu0 0
        %592 = vmatprep.subr.bf16.mxu0 0
        %593 = vmatpush1.bf16.msra.mxu0 0
        %594 = vmatprep.subr.bf16.mxu0 0
        %595 = vmatpush1.bf16.msra.mxu0 0
        %596 = vmatprep.subr.bf16.mxu0 0
        %597 = vmatpush1.bf16.msra.mxu0 0
        %598 = vmatprep.subr.bf16.mxu0 0
        %599 = vmatpush1.bf16.msra.mxu0 0
        %600 = vmatprep.subr.bf16.mxu0 0
        %601 = vmatpush1.bf16.msra.mxu0 0
        %602 = vmatprep.subr.bf16.mxu0 0
        %603 = vmatpush1.bf16.msra.mxu0 0
        %604 = vmatprep.subr.bf16.mxu0 0
        %605 = vmatpush1.bf16.msra.mxu0 0
        %606 = vmatprep.subr.bf16.mxu0 0
        %607 = vmatpush1.bf16.msra.mxu0 0
        %608 = vmatprep.subr.bf16.mxu0 0
        %609 = vmatpush1.bf16.msra.mxu0 0
        %610 = vmatprep.mubr.bf16.mxu0 0
        %611 = vmatmul.mubr.bf16.gmra.mrb[0].mxu0 %v570
        %v612 = vpop.f32.mrb[0].mxu0
        %v613 = vadd.f32 %v567, %v612
        %v614 = vpop.f32.mrb[0].mxu0
        %v615 = vadd.f32 %v567, %v614
        %v616 = vpop.f32.mrb[0].mxu0
        %v617 = vpop.f32.mrb[0].mxu0
        %618 = vdwg.mxu0
        %v619 = vadd.f32 %v613, %v284
        %v620 = vadd.f32 %v615, %v297
        %v623 = vcombine.low %v619, %v620
        %625 = vst [vmem:[%s282] sm:$0xff] %v623
        %s626 = sand.u32 %s163, 1
        %s627 = scalar_lea.sflag [#allocation4], %s626
        %s628 = sand.u32 %s163, 1
        %s629 = smul.addr %s628, 8
        %s630 = scalar_lea.vmem [#allocation7], %s629
        // Predicated region
        $region53: #{tpu_custom_call.1} parent=43 // pred_check
          %p631 = pneg %p173
        $region54: #{tpu_custom_call.1} parent=43 // pred_check_branch
          %633 = sbr.rel (%p631) target = $region56
        $region55: #{tpu_custom_call.1} parent=43 // pred_region
          %s635 = ssub.s32 128, 128
          %636 = vsyncadd %s627, %s635
          %s637 = smul.addr %s24, 2
          %s638 = smul.addr %s637, 64
          %s639 = scalar_lea.hbm %s6, %s638
          %s641 = sshll.u32 %s630, 4
          %s642 = int_to_ptr.vmem [resolvable:$true] %s641
          %644 = dma.vmem_to_hbm [thread:$0]  %s642, 128, %s639, %s627
        $region56: #{tpu_custom_call.1} parent=43 // pred_fallthru
          _
      $region44: #{tpu_custom_call.1} parent=5 // pred_fallthru
        _
      %p645 = scmp.le.s32.totalorder 2, %s19
      // Predicated region
      $region57: #{tpu_custom_call.1} parent=5 // pred_check
        %p646 = pneg %p645
      $region58: #{tpu_custom_call.1} parent=5 // pred_check_branch
        %648 = sbr.rel (%p646) target = $region60
      $region59: #{tpu_custom_call.1} parent=5 // pred_region
        %s649 = ssub.s32 %s19, 2
        // Predicated region
        $region61: #{tpu_custom_call.1} parent=59 // pred_check
          %p650 = pneg %p179
        $region62: #{tpu_custom_call.1} parent=59 // pred_check_branch
          %652 = sbr.rel (%p650) target = $region64
        $region63: #{tpu_custom_call.1} parent=59 // pred_region
          %s653 = sand.u32 %s164, 1
          %s654 = scalar_lea.sflag [#allocation4], %s653
          %s655 = sand.u32 %s164, 1
          %s656 = smul.addr %s655, 8
          %s657 = scalar_lea.vmem [#allocation7], %s656
          %658 = dma.done %s654, 128
        $region64: #{tpu_custom_call.1} parent=59 // pred_fallthru
          _
      $region60: #{tpu_custom_call.1} parent=5 // pred_fallthru
        _
    $region6: #{tpu_custom_call.1} parent=1 // loop_footer
      %s23 = sadd.s32 1, %s19
    $region7: #{tpu_custom_call.1} parent=1 // loop_footer_branch
      %18 = sbr.rel target = $region3
    $region8: #{tpu_custom_call.1} parent=1 // loop_exit
      _
    %659 = vsyncpa [#allocation3], 1
    %s660 = scalar_lea.sflag [#allocation3], 1
    %661 = vsyncpa %s660, 1
    %662 = vsyncpa [#allocation6], 1
    %663 = vsyncpa [#allocation4], 1
    %s664 = scalar_lea.sflag [#allocation4], 1
    %665 = vsyncpa %s664, 1

</llo_original>
